<compile_context>
chip_gen: v7x
topology: tpu7x:2x2x1
jax: 0.10.0
libtpu: 0.0.40
codegen_flags: <defaults>
</compile_context>

<pallas_src>
import math
from functools import partial

import jax
import jax.numpy as jnp
from jax.experimental import pallas as pl
from jax.experimental.pallas import tpu as pltpu


def _round_up(x, m):
    return (x + m - 1) // m * m


def dan_kernel(ids_ref, amask_ref, labels_ref, emb_ref, gru_c_ref,
               w_ih_ref, b_ih_ref, w1_ref, w2_ref, w3_ref, b_mlp_ref,
               out_ref, *, num_labels):
    TB, L = ids_ref.shape
    VP, HP = emb_ref.shape            # padded vocab / padded hidden (lane) dims

    ids = ids_ref[...]                # (TB, L) int32, masked ids (0 where dropped)
    amask = amask_ref[...]            # (TB, L) f32, dropout-ANDed attention mask

    # ---- fused gather + masked-average pooling -------------------------------------
    # bag-of-tokens counts via lane-iota compare, pooled with a single MXU matmul:
    #   sum_l emb[ids[b,l]]  ==  bag[b, :] @ emb_table
    viota = jax.lax.broadcasted_iota(jnp.int32, (TB, L, VP), 2)
    onehot = (viota == ids[:, :, None]).astype(jnp.float32)        # (TB, L, VP)
    bag = jnp.sum(onehot, axis=1).astype(jnp.bfloat16)             # small ints, exact in bf16
    counts = jnp.maximum(jnp.sum(amask, axis=1, keepdims=True), 1.0)
    inv = pl.reciprocal(counts, approx=True)                       # EUP slot, ~free
    summed = jnp.dot(bag, emb_ref[...],
                     preferred_element_type=jnp.float32)           # (TB, HP) f32
    avg = summed * inv

    # ---- single GRU step (gate order r, z, n) --------------------------------------
    # h0 @ W_hh + b_hh is batch-invariant and precomputed in the wrapper:
    # its r/z columns are already folded into b_ih; gh_n and h0 arrive as rows 0/1 here.
    gh_n = gru_c_ref[0:1, :]                                       # (1, HP)
    h0 = gru_c_ref[1:2, :]                                         # (1, HP)
    gates_x = jnp.dot(avg.astype(jnp.bfloat16), w_ih_ref[...],
                      preferred_element_type=jnp.float32) + b_ih_ref[...]   # (TB, 3HP)
    r = jax.nn.sigmoid(gates_x[:, 0:HP])
    z = jax.nn.sigmoid(gates_x[:, HP:2 * HP])
    n = jnp.tanh(gates_x[:, 2 * HP:3 * HP] + r * gh_n)
    h = (1.0 - z) * n + z * h0                                     # (TB, HP)

    # ---- classifier MLP: Linear -> ReLU -> Linear -> ReLU -> Linear -----------------
    def mm(x, w_ref, b):
        return jnp.dot(x.astype(jnp.bfloat16), w_ref[...],
                       preferred_element_type=jnp.float32) + b

    h1 = jnp.maximum(mm(h, w1_ref, b_mlp_ref[0:1, :]), 0.0)
    h2 = jnp.maximum(mm(h1, w2_ref, b_mlp_ref[1:2, :]), 0.0)
    logits = mm(h2, w3_ref, b_mlp_ref[2:3, :])                     # (TB, CP) lane-dense

    # ---- per-example cross-entropy, packed into spare lane CP-1 of the same tile ----
    CP = logits.shape[1]
    lane = jax.lax.broadcasted_iota(jnp.int32, (TB, CP), 1)
    col_valid = lane < num_labels
    ml = jnp.where(col_valid, logits, -jnp.inf)
    m = jnp.max(ml, axis=-1, keepdims=True)
    lse = m + jnp.log(jnp.sum(jnp.exp(ml - m), axis=-1, keepdims=True))    # (TB, 1)
    onehot_lab = lane == labels_ref[...]                                   # (TB, CP)
    picked = jnp.sum(jnp.where(onehot_lab, logits, 0.0), axis=-1, keepdims=True)
    out_ref[...] = jnp.where(lane == CP - 1, lse - picked, logits)


def _fuse_gate_weights(w, H, HP):
    # w: (3H, Din) torch layout, gate order r,z,n -> (HP, 3*HP) padded, columns [r|z|n]
    blocks = []
    for g in range(3):
        wg = w[g * H:(g + 1) * H, :].T                    # (Din, H)
        wg = jnp.pad(wg, ((0, HP - wg.shape[0]), (0, HP - H)))
        blocks.append(wg)
    return jnp.concatenate(blocks, axis=1)


def _fuse_gate_bias(b, H, HP):
    bs = [jnp.pad(b[g * H:(g + 1) * H], (0, HP - H)) for g in range(3)]
    return jnp.concatenate(bs).reshape(1, 3 * HP)


def dan_forward(input_ids, attention_masks, labels, params, dropout_key,
                p=0.3, train=True):
    B, L = input_ids.shape
    emb_table = params["emb"]                  # (V, D) f32
    V, D = emb_table.shape
    H = D                                      # GRU hidden == input size (as in the module)
    C = params["w3"].shape[0]
    HP = _round_up(max(H, 128), 128)           # padded hidden / lane dim
    CP = HP                                    # padded class dim (lane-dense logits)
    VP = _round_up(max(V, 128), 128)           # padded vocab dim

    # dropout: Dropout(ones).bool().int() -> binary keep mask (no 1/(1-p) rescale survives)
    if train:
        keep = (jax.random.uniform(dropout_key, (B, L)) >= p).astype(input_ids.dtype)
    else:
        keep = jnp.ones((B, L), input_ids.dtype)
    att = attention_masks * keep
    masked_ids = (input_ids * att).astype(jnp.int32)          # (B, L) int32
    amask_f = (att != 0).astype(jnp.float32)                  # (B, L) f32

    # ---- batch tiling -----------------------------------------------------------------
    # M (=TB) is the only free MXU dimension; round to 8/128/256 and keep >= 2 tiles for
    # large B so v7x's two TensorCores both get work.  Per-tile working set is tiny
    # (ids/mask/labels + a (TB,128) output + a ~TB*4KiB one-hot intermediate), so VMEM is
    # no longer a constraint on any generation.
    if B <= 128:
        TB = B if B <= 8 else _round_up(B, 8)
    else:
        TB = 256
        if -(-B // TB) < 2:
            TB = 128
    num_tiles = -(-B // TB)
    B_pad = num_tiles * TB
    if B_pad != B:
        masked_ids = jnp.pad(masked_ids, ((0, B_pad - B), (0, 0)))
        amask_f = jnp.pad(amask_f, ((0, B_pad - B), (0, 0)))
        labels_p = jnp.pad(labels, (0, B_pad - B))
    else:
        labels_p = labels
    labels2d = labels_p.reshape(B_pad, 1).astype(jnp.int32)

    # ---- resident, lane-padded, bf16 weights (f32 biases) ------------------------------
    # TODO(synk): for production-size vocabularies the resident (VP, HP) table won't fit
    # VMEM; keep it in HBM and DMA-gather rows with scalar-prefetched ids instead.
    emb_pad = jnp.pad(emb_table.astype(jnp.float32),
                      ((0, VP - V), (0, HP - D))).astype(jnp.bfloat16)       # (VP, HP)

    w_ih_cat = _fuse_gate_weights(params["w_ih"], H, HP).astype(jnp.bfloat16)  # (HP, 3HP)

    # hoist the batch-invariant hidden-side GRU term: gh = W_hh @ h0 + b_hh
    gh = params["w_hh"] @ params["h0"] + params["b_hh"]                        # (3H,)
    b_eff = params["b_ih"] + jnp.concatenate(
        [gh[:2 * H], jnp.zeros((H,), jnp.float32)])                            # fold r,z
    b_ih_cat = _fuse_gate_bias(b_eff, H, HP).astype(jnp.float32)               # (1, 3HP)
    gru_c = jnp.zeros((8, HP), jnp.float32)
    gru_c = gru_c.at[0, :H].set(gh[2 * H:])                                    # gh_n
    gru_c = gru_c.at[1, :H].set(params["h0"])                                  # h0

    def pad2(w, rows, cols):
        return jnp.pad(w, ((0, rows - w.shape[0]), (0, cols - w.shape[1])))

    w1 = pad2(params["w1"].T, HP, HP).astype(jnp.bfloat16)
    w2 = pad2(params["w2"].T, HP, HP).astype(jnp.bfloat16)
    w3 = pad2(params["w3"].T, HP, CP).astype(jnp.bfloat16)
    b_mlp = jnp.stack([jnp.pad(params["b1"], (0, HP - H)),
                       jnp.pad(params["b2"], (0, HP - H)),
                       jnp.pad(params["b3"], (0, CP - C))]).astype(jnp.float32)  # (3, HP)

    def resident(shape):
        n = len(shape)
        return pl.BlockSpec(shape, lambda i, _n=n: (0,) * _n)

    kernel = partial(dan_kernel, num_labels=C)

    out = pl.pallas_call(
        kernel,
        grid=(num_tiles,),
        in_specs=[
            pl.BlockSpec((TB, L), lambda i: (i, 0)),          # masked ids (int32)
            pl.BlockSpec((TB, L), lambda i: (i, 0)),          # dropout-ANDed mask (f32)
            pl.BlockSpec((TB, 1), lambda i: (i, 0)),          # labels (int32)
            resident((VP, HP)),                               # embedding table (bf16)
            resident((8, HP)),                                # gru consts: gh_n, h0
            resident((HP, 3 * HP)),                           # W_ih (fused gates)
            resident((1, 3 * HP)),                            # b_ih (+ folded gh_r, gh_z)
            resident((HP, HP)),                               # w1
            resident((HP, HP)),                               # w2
            resident((HP, CP)),                               # w3
            resident((3, HP)),                                # packed MLP biases
        ],
        out_specs=pl.BlockSpec((TB, CP), lambda i: (i, 0)),   # logits + CE in lane CP-1
        out_shape=jax.ShapeDtypeStruct((B_pad, CP), jnp.float32),
        compiler_params=pltpu.CompilerParams(
            dimension_semantics=("parallel",),                # v7x: shard batch over 2 TCs
            vmem_limit_bytes=32 * 1024 * 1024),               # far above actual usage; safe on all gens
    )(masked_ids, amask_f, labels2d, emb_pad, gru_c,
      w_ih_cat, b_ih_cat, w1, w2, w3, b_mlp)

    logits = out[:B, :C]
    per_ex = out[:B, CP - 1]
    loss = jnp.sum(per_ex) / B                                # CrossEntropyLoss mean
    return {"loss": loss, "logits": logits}


def init_params(key, vocab, hidden, num_labels):
    ks = jax.random.split(key, 12)
    bound = 1.0 / math.sqrt(hidden)
    u = lambda k, shape: jax.random.uniform(k, shape, jnp.float32, -bound, bound)
    return {
        "emb":  jax.random.normal(ks[0], (vocab, hidden), jnp.float32),  # glove.npy stand-in
        "w_ih": u(ks[1], (3 * hidden, hidden)),
        "w_hh": u(ks[2], (3 * hidden, hidden)),
        "b_ih": u(ks[3], (3 * hidden,)),
        "b_hh": u(ks[4], (3 * hidden,)),
        "h0":   jax.random.normal(ks[5], (hidden,), jnp.float32),        # torch.randn(H)
        "w1":   u(ks[6], (hidden, hidden)),
        "b1":   u(ks[7], (hidden,)),
        "w2":   u(ks[8], (hidden, hidden)),
        "b2":   u(ks[9], (hidden,)),
        "w3":   u(ks[10], (num_labels, hidden)),
        "b3":   u(ks[11], (num_labels,)),
    }


if __name__ == "__main__":
    VOCAB, HIDDEN, NUM_LABELS = 50, 32, 7
    B, L = 2, 8

    root = jax.random.PRNGKey(0)
    k_param, k_ids, k_lab, k_drop = jax.random.split(root, 4)

    params = init_params(k_param, VOCAB, HIDDEN, NUM_LABELS)

    input_ids = jax.random.randint(k_ids, (B, L), 1, VOCAB, dtype=jnp.int32)
    attention_masks = jnp.array(
        [[1, 1, 1, 1, 1, 1, 1, 1],
         [1, 1, 1, 1, 1, 0, 0, 0]], dtype=jnp.int32)
    labels = jax.random.randint(k_lab, (B,), 0, NUM_LABELS, dtype=jnp.int32)

    out = dan_forward(input_ids, attention_masks, labels, params, k_drop)
    jax.block_until_ready(out)

    assert out["logits"].shape == (B, NUM_LABELS)
    assert out["loss"].shape == ()
    assert bool(jnp.isfinite(out["loss"]))
    print("KERNEL_OK")
</pallas_src>

<mosaic_0001>
module attributes {stable_mosaic.version = 11 : i64} {
  func.func @dan_kernel(%arg0: i32, %arg1: memref<2x8xi32, #tpu.memory_space<vmem>>, %arg2: memref<2x8xf32, #tpu.memory_space<vmem>>, %arg3: memref<2x1xi32, #tpu.memory_space<vmem>>, %arg4: memref<128x128xbf16, #tpu.memory_space<vmem>>, %arg5: memref<8x128xf32, #tpu.memory_space<vmem>>, %arg6: memref<128x384xbf16, #tpu.memory_space<vmem>>, %arg7: memref<1x384xf32, #tpu.memory_space<vmem>>, %arg8: memref<128x128xbf16, #tpu.memory_space<vmem>>, %arg9: memref<128x128xbf16, #tpu.memory_space<vmem>>, %arg10: memref<128x128xbf16, #tpu.memory_space<vmem>>, %arg11: memref<3x128xf32, #tpu.memory_space<vmem>>, %arg12: memref<2x128xf32, #tpu.memory_space<vmem>>) attributes {dimension_semantics = [#tpu.dimension_semantics<parallel>], iteration_bounds = array<i64: 1>, scalar_prefetch = 0 : i64, scratch_operands = 0 : i64, tpu.core_type = #tpu.core_type<tc>, window_params = [{transform_indices = @transform_0, window_bounds = array<i64: 2, 8>}, {transform_indices = @transform_1, window_bounds = array<i64: 2, 8>}, {transform_indices = @transform_2, window_bounds = array<i64: 2, 1>}, {pipeline_mode = #tpu.pipeline_mode<synchronous>, transform_indices = @transform_3, window_bounds = array<i64: 128, 128>}, {pipeline_mode = #tpu.pipeline_mode<synchronous>, transform_indices = @transform_4, window_bounds = array<i64: 8, 128>}, {pipeline_mode = #tpu.pipeline_mode<synchronous>, transform_indices = @transform_5, window_bounds = array<i64: 128, 384>}, {pipeline_mode = #tpu.pipeline_mode<synchronous>, transform_indices = @transform_6, window_bounds = array<i64: 1, 384>}, {pipeline_mode = #tpu.pipeline_mode<synchronous>, transform_indices = @transform_7, window_bounds = array<i64: 128, 128>}, {pipeline_mode = #tpu.pipeline_mode<synchronous>, transform_indices = @transform_8, window_bounds = array<i64: 128, 128>}, {pipeline_mode = #tpu.pipeline_mode<synchronous>, transform_indices = @transform_9, window_bounds = array<i64: 128, 128>}, {pipeline_mode = #tpu.pipeline_mode<synchronous>, transform_indices = @transform_10, window_bounds = array<i64: 3, 128>}, {transform_indices = @transform_11, window_bounds = array<i64: 2, 128>}]} {
    %c0 = arith.constant 0 : index
    %c0_0 = arith.constant 0 : index
    %0 = vector.load %arg1[%c0, %c0_0] : memref<2x8xi32, #tpu.memory_space<vmem>>, vector<2x8xi32>
    %c0_1 = arith.constant 0 : index
    %c0_2 = arith.constant 0 : index
    %1 = vector.load %arg2[%c0_1, %c0_2] : memref<2x8xf32, #tpu.memory_space<vmem>>, vector<2x8xf32>
    %2 = tpu.iota {dimensions = array<i32: 2>} : vector<2x8x128xi32>
    %3 = vector.shape_cast %0 : vector<2x8xi32> to vector<2x8x1xi32>
    %4 = vector.broadcast %3 : vector<2x8x1xi32> to vector<2x8x128xi32>
    %5 = arith.cmpi eq, %2, %4 : vector<2x8x128xi32>
    %6 = arith.extui %5 : vector<2x8x128xi1> to vector<2x8x128xi32>
    %7 = arith.sitofp %6 : vector<2x8x128xi32> to vector<2x8x128xf32>
    %cst = arith.constant dense<0.000000e+00> : vector<2x128xf32>
    %8 = vector.multi_reduction <add>, %7, %cst [1] : vector<2x8x128xf32> to vector<2x128xf32>
    %9 = arith.truncf %8 : vector<2x128xf32> to vector<2x128xbf16>
    %cst_3 = arith.constant dense<0.000000e+00> : vector<2xf32>
    %10 = vector.multi_reduction <add>, %1, %cst_3 [1] : vector<2x8xf32> to vector<2xf32>
    %11 = vector.shape_cast %10 : vector<2xf32> to vector<2x1xf32>
    %cst_4 = arith.constant 1.000000e+00 : f32
    %12 = vector.broadcast %cst_4 : f32 to vector<2x1xf32>
    %13 = arith.maximumf %11, %12 : vector<2x1xf32>
    %14 = tpu.reciprocal %13 {approx = true} : vector<2x1xf32> -> vector<2x1xf32>
    %c0_5 = arith.constant 0 : index
    %c0_6 = arith.constant 0 : index
    %15 = vector.load %arg4[%c0_5, %c0_6] : memref<128x128xbf16, #tpu.memory_space<vmem>>, vector<128x128xbf16>
    %cst_7 = arith.constant dense<0.000000e+00> : vector<2x128xf32>
    %16 = tpu.matmul %9, %15, %cst_7 {dimension_numbers = #tpu.dot_dimension_numbers<[1], [0], [0], [1], [0, 0, 1, 1], [], []>} : vector<2x128xbf16>, vector<128x128xbf16>, vector<2x128xf32> -> vector<2x128xf32>
    %17 = vector.broadcast %14 : vector<2x1xf32> to vector<2x128xf32>
    %18 = arith.mulf %16, %17 : vector<2x128xf32>
    %c0_8 = arith.constant 0 : index
    %c0_9 = arith.constant 0 : index
    %19 = vector.load %arg5[%c0_8, %c0_9] : memref<8x128xf32, #tpu.memory_space<vmem>>, vector<1x128xf32>
    %c1 = arith.constant 1 : index
    %c0_10 = arith.constant 0 : index
    %20 = vector.load %arg5[%c1, %c0_10] : memref<8x128xf32, #tpu.memory_space<vmem>>, vector<1x128xf32>
    %21 = arith.truncf %18 : vector<2x128xf32> to vector<2x128xbf16>
    %c0_11 = arith.constant 0 : index
    %c0_12 = arith.constant 0 : index
    %22 = vector.load %arg6[%c0_11, %c0_12] : memref<128x384xbf16, #tpu.memory_space<vmem>>, vector<128x384xbf16>
    %cst_13 = arith.constant dense<0.000000e+00> : vector<2x384xf32>
    %23 = tpu.matmul %21, %22, %cst_13 {dimension_numbers = #tpu.dot_dimension_numbers<[1], [0], [0], [1], [0, 0, 1, 1], [], []>} : vector<2x128xbf16>, vector<128x384xbf16>, vector<2x384xf32> -> vector<2x384xf32>
    %c0_14 = arith.constant 0 : index
    %c0_15 = arith.constant 0 : index
    %24 = vector.load %arg7[%c0_14, %c0_15] : memref<1x384xf32, #tpu.memory_space<vmem>>, vector<1x384xf32>
    %25 = vector.broadcast %24 : vector<1x384xf32> to vector<2x384xf32>
    %26 = arith.addf %23, %25 : vector<2x384xf32>
    %27 = vector.extract_strided_slice %26 {offsets = [0, 0], sizes = [2, 128], strides = [1, 1]} : vector<2x384xf32> to vector<2x128xf32>
    %28 = arith.negf %27 : vector<2x128xf32>
    %29 = math.exp %28 : vector<2x128xf32>
    %cst_16 = arith.constant 1.000000e+00 : f32
    %30 = vector.broadcast %cst_16 : f32 to vector<2x128xf32>
    %31 = arith.addf %30, %29 : vector<2x128xf32>
    %32 = arith.divf %30, %31 : vector<2x128xf32>
    %33 = vector.extract_strided_slice %26 {offsets = [0, 128], sizes = [2, 128], strides = [1, 1]} : vector<2x384xf32> to vector<2x128xf32>
    %34 = arith.negf %33 : vector<2x128xf32>
    %35 = math.exp %34 : vector<2x128xf32>
    %cst_17 = arith.constant 1.000000e+00 : f32
    %36 = vector.broadcast %cst_17 : f32 to vector<2x128xf32>
    %37 = arith.addf %36, %35 : vector<2x128xf32>
    %38 = arith.divf %36, %37 : vector<2x128xf32>
    %39 = vector.extract_strided_slice %26 {offsets = [0, 256], sizes = [2, 128], strides = [1, 1]} : vector<2x384xf32> to vector<2x128xf32>
    %40 = vector.broadcast %19 : vector<1x128xf32> to vector<2x128xf32>
    %41 = arith.mulf %32, %40 : vector<2x128xf32>
    %42 = arith.addf %39, %41 : vector<2x128xf32>
    %43 = math.tanh %42 : vector<2x128xf32>
    %cst_18 = arith.constant 1.000000e+00 : f32
    %44 = vector.broadcast %cst_18 : f32 to vector<2x128xf32>
    %45 = arith.subf %44, %38 : vector<2x128xf32>
    %46 = arith.mulf %45, %43 : vector<2x128xf32>
    %47 = vector.broadcast %20 : vector<1x128xf32> to vector<2x128xf32>
    %48 = arith.mulf %38, %47 : vector<2x128xf32>
    %49 = arith.addf %46, %48 : vector<2x128xf32>
    %c0_19 = arith.constant 0 : index
    %c0_20 = arith.constant 0 : index
    %50 = vector.load %arg11[%c0_19, %c0_20] : memref<3x128xf32, #tpu.memory_space<vmem>>, vector<1x128xf32>
    %51 = arith.truncf %49 : vector<2x128xf32> to vector<2x128xbf16>
    %c0_21 = arith.constant 0 : index
    %c0_22 = arith.constant 0 : index
    %52 = vector.load %arg8[%c0_21, %c0_22] : memref<128x128xbf16, #tpu.memory_space<vmem>>, vector<128x128xbf16>
    %cst_23 = arith.constant dense<0.000000e+00> : vector<2x128xf32>
    %53 = tpu.matmul %51, %52, %cst_23 {dimension_numbers = #tpu.dot_dimension_numbers<[1], [0], [0], [1], [0, 0, 1, 1], [], []>} : vector<2x128xbf16>, vector<128x128xbf16>, vector<2x128xf32> -> vector<2x128xf32>
    %54 = vector.broadcast %50 : vector<1x128xf32> to vector<2x128xf32>
    %55 = arith.addf %53, %54 : vector<2x128xf32>
    %cst_24 = arith.constant 0.000000e+00 : f32
    %56 = vector.broadcast %cst_24 : f32 to vector<2x128xf32>
    %57 = arith.maximumf %55, %56 : vector<2x128xf32>
    %c1_25 = arith.constant 1 : index
    %c0_26 = arith.constant 0 : index
    %58 = vector.load %arg11[%c1_25, %c0_26] : memref<3x128xf32, #tpu.memory_space<vmem>>, vector<1x128xf32>
    %59 = arith.truncf %57 : vector<2x128xf32> to vector<2x128xbf16>
    %c0_27 = arith.constant 0 : index
    %c0_28 = arith.constant 0 : index
    %60 = vector.load %arg9[%c0_27, %c0_28] : memref<128x128xbf16, #tpu.memory_space<vmem>>, vector<128x128xbf16>
    %cst_29 = arith.constant dense<0.000000e+00> : vector<2x128xf32>
    %61 = tpu.matmul %59, %60, %cst_29 {dimension_numbers = #tpu.dot_dimension_numbers<[1], [0], [0], [1], [0, 0, 1, 1], [], []>} : vector<2x128xbf16>, vector<128x128xbf16>, vector<2x128xf32> -> vector<2x128xf32>
    %62 = vector.broadcast %58 : vector<1x128xf32> to vector<2x128xf32>
    %63 = arith.addf %61, %62 : vector<2x128xf32>
    %cst_30 = arith.constant 0.000000e+00 : f32
    %64 = vector.broadcast %cst_30 : f32 to vector<2x128xf32>
    %65 = arith.maximumf %63, %64 : vector<2x128xf32>
    %c2 = arith.constant 2 : index
    %c0_31 = arith.constant 0 : index
    %66 = vector.load %arg11[%c2, %c0_31] : memref<3x128xf32, #tpu.memory_space<vmem>>, vector<1x128xf32>
    %67 = arith.truncf %65 : vector<2x128xf32> to vector<2x128xbf16>
    %c0_32 = arith.constant 0 : index
    %c0_33 = arith.constant 0 : index
    %68 = vector.load %arg10[%c0_32, %c0_33] : memref<128x128xbf16, #tpu.memory_space<vmem>>, vector<128x128xbf16>
    %cst_34 = arith.constant dense<0.000000e+00> : vector<2x128xf32>
    %69 = tpu.matmul %67, %68, %cst_34 {dimension_numbers = #tpu.dot_dimension_numbers<[1], [0], [0], [1], [0, 0, 1, 1], [], []>} : vector<2x128xbf16>, vector<128x128xbf16>, vector<2x128xf32> -> vector<2x128xf32>
    %70 = vector.broadcast %66 : vector<1x128xf32> to vector<2x128xf32>
    %71 = arith.addf %69, %70 : vector<2x128xf32>
    %72 = tpu.iota {dimensions = array<i32: 1>} : vector<2x128xi32>
    %c7_i32 = arith.constant 7 : i32
    %73 = vector.broadcast %c7_i32 : i32 to vector<2x128xi32>
    %74 = arith.cmpi slt, %72, %73 : vector<2x128xi32>
    %cst_35 = arith.constant 0xFF800000 : f32
    %75 = vector.broadcast %cst_35 : f32 to vector<2x128xf32>
    %76 = arith.select %74, %71, %75 : vector<2x128xi1>, vector<2x128xf32>
    %cst_36 = arith.constant dense<0xFF800000> : vector<2xf32>
    %77 = vector.multi_reduction <maximumf>, %76, %cst_36 [1] : vector<2x128xf32> to vector<2xf32>
    %78 = vector.shape_cast %77 : vector<2xf32> to vector<2x1xf32>
    %79 = vector.broadcast %78 : vector<2x1xf32> to vector<2x128xf32>
    %80 = arith.subf %76, %79 : vector<2x128xf32>
    %81 = math.exp %80 : vector<2x128xf32>
    %cst_37 = arith.constant dense<0.000000e+00> : vector<2xf32>
    %82 = vector.multi_reduction <add>, %81, %cst_37 [1] : vector<2x128xf32> to vector<2xf32>
    %83 = vector.shape_cast %82 : vector<2xf32> to vector<2x1xf32>
    %84 = math.log %83 : vector<2x1xf32>
    %85 = arith.addf %78, %84 : vector<2x1xf32>
    %c0_38 = arith.constant 0 : index
    %c0_39 = arith.constant 0 : index
    %86 = vector.load %arg3[%c0_38, %c0_39] : memref<2x1xi32, #tpu.memory_space<vmem>>, vector<2x1xi32>
    %87 = vector.broadcast %86 : vector<2x1xi32> to vector<2x128xi32>
    %88 = arith.cmpi eq, %72, %87 : vector<2x128xi32>
    %cst_40 = arith.constant 0.000000e+00 : f32
    %89 = vector.broadcast %cst_40 : f32 to vector<2x128xf32>
    %90 = arith.select %88, %71, %89 : vector<2x128xi1>, vector<2x128xf32>
    %cst_41 = arith.constant dense<0.000000e+00> : vector<2xf32>
    %91 = vector.multi_reduction <add>, %90, %cst_41 [1] : vector<2x128xf32> to vector<2xf32>
    %92 = vector.shape_cast %91 : vector<2xf32> to vector<2x1xf32>
    %c127_i32 = arith.constant 127 : i32
    %93 = vector.broadcast %c127_i32 : i32 to vector<2x128xi32>
    %94 = arith.cmpi eq, %72, %93 : vector<2x128xi32>
    %95 = arith.subf %85, %92 : vector<2x1xf32>
    %96 = vector.shape_cast %95 : vector<2x1xf32> to vector<2x1xf32>
    %97 = vector.broadcast %96 : vector<2x1xf32> to vector<2x128xf32>
    %98 = arith.select %94, %97, %71 : vector<2x128xi1>, vector<2x128xf32>
    %c0_42 = arith.constant 0 : index
    %c0_43 = arith.constant 0 : index
    %99 = vector.load %arg12[%c0_42, %c0_43] : memref<2x128xf32, #tpu.memory_space<vmem>>, vector<2x128xf32>
    tpu.vector_store %arg12[%c0_42, %c0_43], %98 {strides = array<i32>} : memref<2x128xf32, #tpu.memory_space<vmem>>, vector<2x128xf32>,
    return
  }
  func.func @transform_0(%arg0: i32) -> (i32, i32) {
    %c0_i32 = arith.constant 0 : i32
    %c0_i32_0 = arith.constant 0 : i32
    return %arg0, %c0_i32 : i32, i32
  }
  func.func @transform_1(%arg0: i32) -> (i32, i32) {
    %c0_i32 = arith.constant 0 : i32
    %c0_i32_0 = arith.constant 0 : i32
    return %arg0, %c0_i32 : i32, i32
  }
  func.func @transform_2(%arg0: i32) -> (i32, i32) {
    %c0_i32 = arith.constant 0 : i32
    %c0_i32_0 = arith.constant 0 : i32
    return %arg0, %c0_i32 : i32, i32
  }
  func.func @transform_3(%arg0: i32) -> (i32, i32) {
    %c0_i32 = arith.constant 0 : i32
    %c0_i32_0 = arith.constant 0 : i32
    %c0_i32_1 = arith.constant 0 : i32
    return %c0_i32, %c0_i32_0 : i32, i32
  }
  func.func @transform_4(%arg0: i32) -> (i32, i32) {
    %c0_i32 = arith.constant 0 : i32
    %c0_i32_0 = arith.constant 0 : i32
    %c0_i32_1 = arith.constant 0 : i32
    return %c0_i32, %c0_i32_0 : i32, i32
  }
  func.func @transform_5(%arg0: i32) -> (i32, i32) {
    %c0_i32 = arith.constant 0 : i32
    %c0_i32_0 = arith.constant 0 : i32
    %c0_i32_1 = arith.constant 0 : i32
    return %c0_i32, %c0_i32_0 : i32, i32
  }
  func.func @transform_6(%arg0: i32) -> (i32, i32) {
    %c0_i32 = arith.constant 0 : i32
    %c0_i32_0 = arith.constant 0 : i32
    %c0_i32_1 = arith.constant 0 : i32
    return %c0_i32, %c0_i32_0 : i32, i32
  }
  func.func @transform_7(%arg0: i32) -> (i32, i32) {
    %c0_i32 = arith.constant 0 : i32
    %c0_i32_0 = arith.constant 0 : i32
    %c0_i32_1 = arith.constant 0 : i32
    return %c0_i32, %c0_i32_0 : i32, i32
  }
  func.func @transform_8(%arg0: i32) -> (i32, i32) {
    %c0_i32 = arith.constant 0 : i32
    %c0_i32_0 = arith.constant 0 : i32
    %c0_i32_1 = arith.constant 0 : i32
    return %c0_i32, %c0_i32_0 : i32, i32
  }
  func.func @transform_9(%arg0: i32) -> (i32, i32) {
    %c0_i32 = arith.constant 0 : i32
    %c0_i32_0 = arith.constant 0 : i32
    %c0_i32_1 = arith.constant 0 : i32
    return %c0_i32, %c0_i32_0 : i32, i32
  }
  func.func @transform_10(%arg0: i32) -> (i32, i32) {
    %c0_i32 = arith.constant 0 : i32
    %c0_i32_0 = arith.constant 0 : i32
    %c0_i32_1 = arith.constant 0 : i32
    return %c0_i32, %c0_i32_0 : i32, i32
  }
  func.func @transform_11(%arg0: i32) -> (i32, i32) {
    %c0_i32 = arith.constant 0 : i32
    %c0_i32_0 = arith.constant 0 : i32
    return %arg0, %c0_i32 : i32, i32
  }
}

</mosaic_0001>

<llo_original>
// kernel: tpu_custom_call.1
$region0: #{tpu_custom_call.1}
  #allocation0 [shape = 'u32[]', space=smem, size = 0x4, offset = 0x4, fixed_abs, tag = 'smem constant byte address 0x4 - core index']
  #allocation1 [shape = 'u32[144,128]{1,0:T(1,128)}', space=vmem, size = 0x12000, scoped, tag = 'internal scratch']
  %s0 = inlined_call_operand.hbm [shape: s32[2,8], index: 0, kind: input, shape index: {}]
  %s1 = inlined_call_operand.hbm [shape: f32[2,8], index: 1, kind: input, shape index: {}]
  %s2 = inlined_call_operand.vmem [shape: s32[2,1], index: 2, kind: input, shape index: {}]
  %s3 = inlined_call_operand.hbm [shape: bf16[128,128], index: 3, kind: input, shape index: {}]
  %s4 = inlined_call_operand.vmem [shape: f32[8,128], index: 4, kind: input, shape index: {}]
  %s5 = inlined_call_operand.hbm [shape: bf16[128,384], index: 5, kind: input, shape index: {}]
  %s6 = inlined_call_operand.vmem [shape: f32[1,384], index: 6, kind: input, shape index: {}]
  %s7 = inlined_call_operand.hbm [shape: bf16[128,128], index: 7, kind: input, shape index: {}]
  %s8 = inlined_call_operand.hbm [shape: bf16[128,128], index: 8, kind: input, shape index: {}]
  %s9 = inlined_call_operand.hbm [shape: bf16[128,128], index: 9, kind: input, shape index: {}]
  %s10 = inlined_call_operand.vmem [shape: f32[3,128], index: 10, kind: input, shape index: {}]
  %s11 = inlined_call_operand.hbm [shape: f32[2,128], index: 11, kind: output, shape index: {}]
  %s12 = sld [smem:[#allocation0]]
  $region82: #{tpu_custom_call.1} parent=0
    _
  %s14 = ssub.s32 1, %s12
  %s15 = scalar_select 0, %s14, %s12
  $region1: #{tpu_custom_call.1} parent=0
    #allocation2 [shape = 'u8[1024]{0}', space=vmem, size = 0x400, scoped, tag = 'input window, operand 0, single buffered']
    #allocation3 [shape = 's32[1]{0}', space=sflag, size = 0x4, scoped, tag = 'scoped memory for tpu_custom_call.1']
    #allocation4 [shape = 's32[1]{0}', space=sflag, size = 0x4, scoped, tag = 'scoped memory for tpu_custom_call.1']
    #allocation5 [shape = 'u8[1024]{0}', space=vmem, size = 0x400, scoped, tag = 'input window, operand 1, single buffered']
    #allocation6 [shape = 's32[1]{0}', space=sflag, size = 0x4, scoped, tag = 'scoped memory for tpu_custom_call.1']
    #allocation7 [shape = 'u8[32768]{0}', space=vmem, size = 0x8000, scoped, tag = 'input window, operand 3, single buffered']
    #allocation8 [shape = 'u8[98304]{0}', space=vmem, size = 0x18000, scoped, tag = 'input window, operand 5, single buffered']
    #allocation9 [shape = 's32[1]{0}', space=sflag, size = 0x4, scoped, tag = 'scoped memory for tpu_custom_call.1']
    #allocation10 [shape = 'u8[32768]{0}', space=vmem, size = 0x8000, scoped, tag = 'input window, operand 7, single buffered']
    #allocation11 [shape = 'u8[32768]{0}', space=vmem, size = 0x8000, scoped, tag = 'input window, operand 8, single buffered']
    #allocation12 [shape = 's32[1]{0}', space=sflag, size = 0x4, scoped, tag = 'scoped memory for tpu_custom_call.1']
    #allocation13 [shape = 'u8[32768]{0}', space=vmem, size = 0x8000, scoped, tag = 'input window, operand 9, single buffered']
    #allocation14 [shape = 'u8[1024]{0}', space=vmem, size = 0x400, scoped, tag = 'output window, operand 0, single buffered']
    %16 = vsyncpa [#allocation3], 0
    %17 = vsyncpa [#allocation6], 0
    %18 = vsyncpa [#allocation9], 0
    %19 = vsyncpa [#allocation12], 0
    %20 = vsyncpa [#allocation4], 0
    // Predicated region
    $region2: #{tpu_custom_call.1} parent=1 // pred_check
      _
    $region3: #{tpu_custom_call.1} parent=1 // pred_check_branch
      %22 = sbr.rel (0) target = $region5
    $region4: #{tpu_custom_call.1} parent=1 // pred_region
      %s24 = ssub.s32 32, 32
      %25 = vsyncadd [#allocation3], %s24
      %s27 = sshll.u32 [#allocation2], 4
      %s28 = int_to_ptr.vmem [resolvable:$true] %s27
      %30 = dma.hbm_to_vmem [thread:$0]  %s0, 32, %s28, [#allocation3]
    $region5: #{tpu_custom_call.1} parent=1 // pred_fallthru
      _
    // Predicated region
    $region6: #{tpu_custom_call.1} parent=1 // pred_check
      _
    $region7: #{tpu_custom_call.1} parent=1 // pred_check_branch
      %32 = sbr.rel (0) target = $region9
    $region8: #{tpu_custom_call.1} parent=1 // pred_region
      %s34 = ssub.s32 32, 32
      %35 = vsyncadd [#allocation6], %s34
      %s37 = sshll.u32 [#allocation5], 4
      %s38 = int_to_ptr.vmem [resolvable:$true] %s37
      %40 = dma.hbm_to_vmem [thread:$0]  %s1, 32, %s38, [#allocation6]
    $region9: #{tpu_custom_call.1} parent=1 // pred_fallthru
      _
    // Predicated region
    $region10: #{tpu_custom_call.1} parent=1 // pred_check
      _
    $region11: #{tpu_custom_call.1} parent=1 // pred_check_branch
      %42 = sbr.rel (0) target = $region13
    $region12: #{tpu_custom_call.1} parent=1 // pred_region
      _
    $region13: #{tpu_custom_call.1} parent=1 // pred_fallthru
      _
    // Predicated region
    $region14: #{tpu_custom_call.1} parent=1 // pred_check
      _
    $region15: #{tpu_custom_call.1} parent=1 // pred_check_branch
      %44 = sbr.rel (0) target = $region17
    $region16: #{tpu_custom_call.1} parent=1 // pred_region
      %s46 = ssub.s32 1024, 1024
      %47 = vsyncadd [#allocation6], %s46
      %s48 = sshll.u32 [#allocation7], 4
      %s49 = int_to_ptr.vmem [resolvable:$true] %s48
      %54 = dma.hbm_to_vmem [thread:$0]  %s3, 1024, %s49, [#allocation6], 64, 64, 4
    $region17: #{tpu_custom_call.1} parent=1 // pred_fallthru
      _
    // Predicated region
    $region18: #{tpu_custom_call.1} parent=1 // pred_check
      _
    $region19: #{tpu_custom_call.1} parent=1 // pred_check_branch
      %56 = sbr.rel (0) target = $region21
    $region20: #{tpu_custom_call.1} parent=1 // pred_region
      _
    $region21: #{tpu_custom_call.1} parent=1 // pred_fallthru
      _
    // Predicated region
    $region22: #{tpu_custom_call.1} parent=1 // pred_check
      _
    $region23: #{tpu_custom_call.1} parent=1 // pred_check_branch
      %58 = sbr.rel (0) target = $region25
    $region24: #{tpu_custom_call.1} parent=1 // pred_region
      %s60 = ssub.s32 3072, 3072
      %61 = vsyncadd [#allocation9], %s60
      %s62 = sshll.u32 [#allocation8], 4
      %s63 = int_to_ptr.vmem [resolvable:$true] %s62
      %68 = dma.hbm_to_vmem [thread:$0]  %s5, 3072, %s63, [#allocation9], 192, 192, 12
    $region25: #{tpu_custom_call.1} parent=1 // pred_fallthru
      _
    // Predicated region
    $region26: #{tpu_custom_call.1} parent=1 // pred_check
      _
    $region27: #{tpu_custom_call.1} parent=1 // pred_check_branch
      %70 = sbr.rel (0) target = $region29
    $region28: #{tpu_custom_call.1} parent=1 // pred_region
      _
    $region29: #{tpu_custom_call.1} parent=1 // pred_fallthru
      _
    // Predicated region
    $region30: #{tpu_custom_call.1} parent=1 // pred_check
      _
    $region31: #{tpu_custom_call.1} parent=1 // pred_check_branch
      %72 = sbr.rel (0) target = $region33
    $region32: #{tpu_custom_call.1} parent=1 // pred_region
      %s74 = ssub.s32 1024, 1024
      %75 = vsyncadd [#allocation9], %s74
      %s76 = sshll.u32 [#allocation10], 4
      %s77 = int_to_ptr.vmem [resolvable:$true] %s76
      %82 = dma.hbm_to_vmem [thread:$0]  %s7, 1024, %s77, [#allocation9], 64, 64, 4
    $region33: #{tpu_custom_call.1} parent=1 // pred_fallthru
      _
    // Predicated region
    $region34: #{tpu_custom_call.1} parent=1 // pred_check
      _
    $region35: #{tpu_custom_call.1} parent=1 // pred_check_branch
      %84 = sbr.rel (0) target = $region37
    $region36: #{tpu_custom_call.1} parent=1 // pred_region
      %s86 = ssub.s32 1024, 1024
      %87 = vsyncadd [#allocation12], %s86
      %s88 = sshll.u32 [#allocation11], 4
      %s89 = int_to_ptr.vmem [resolvable:$true] %s88
      %94 = dma.hbm_to_vmem [thread:$0]  %s8, 1024, %s89, [#allocation12], 64, 64, 4
    $region37: #{tpu_custom_call.1} parent=1 // pred_fallthru
      _
    // Predicated region
    $region38: #{tpu_custom_call.1} parent=1 // pred_check
      _
    $region39: #{tpu_custom_call.1} parent=1 // pred_check_branch
      %96 = sbr.rel (0) target = $region41
    $region40: #{tpu_custom_call.1} parent=1 // pred_region
      %s98 = ssub.s32 1024, 1024
      %99 = vsyncadd [#allocation12], %s98
      %s100 = sshll.u32 [#allocation13], 4
      %s101 = int_to_ptr.vmem [resolvable:$true] %s100
      %106 = dma.hbm_to_vmem [thread:$0]  %s9, 1024, %s101, [#allocation12], 64, 64, 4
    $region41: #{tpu_custom_call.1} parent=1 // pred_fallthru
      _
    // Predicated region
    $region42: #{tpu_custom_call.1} parent=1 // pred_check
      _
    $region43: #{tpu_custom_call.1} parent=1 // pred_check_branch
      %108 = sbr.rel (0) target = $region45
    $region44: #{tpu_custom_call.1} parent=1 // pred_region
      _
    $region45: #{tpu_custom_call.1} parent=1 // pred_fallthru
      _
    // Predicated region
    $region46: #{tpu_custom_call.1} parent=1 // pred_check
      _
    $region47: #{tpu_custom_call.1} parent=1 // pred_check_branch
      %110 = sbr.rel (0) target = $region49
    $region48: #{tpu_custom_call.1} parent=1 // pred_region
      %111 = dma.done [#allocation3], 32
    $region49: #{tpu_custom_call.1} parent=1 // pred_fallthru
      _
    // Predicated region
    $region50: #{tpu_custom_call.1} parent=1 // pred_check
      _
    $region51: #{tpu_custom_call.1} parent=1 // pred_check_branch
      %113 = sbr.rel (0) target = $region53
    $region52: #{tpu_custom_call.1} parent=1 // pred_region
      %114 = dma.done [#allocation6], 32
    $region53: #{tpu_custom_call.1} parent=1 // pred_fallthru
      _
    // Predicated region
    $region54: #{tpu_custom_call.1} parent=1 // pred_check
      _
    $region55: #{tpu_custom_call.1} parent=1 // pred_check_branch
      %116 = sbr.rel (0) target = $region57
    $region56: #{tpu_custom_call.1} parent=1 // pred_region
      %117 = dma.done [#allocation6], 1024
    $region57: #{tpu_custom_call.1} parent=1 // pred_fallthru
      _
    // Predicated region
    $region58: #{tpu_custom_call.1} parent=1 // pred_check
      _
    $region59: #{tpu_custom_call.1} parent=1 // pred_check_branch
      %119 = sbr.rel (0) target = $region61
    $region60: #{tpu_custom_call.1} parent=1 // pred_region
      %120 = dma.done [#allocation9], 3072
    $region61: #{tpu_custom_call.1} parent=1 // pred_fallthru
      _
    // Predicated region
    $region62: #{tpu_custom_call.1} parent=1 // pred_check
      _
    $region63: #{tpu_custom_call.1} parent=1 // pred_check_branch
      %122 = sbr.rel (0) target = $region65
    $region64: #{tpu_custom_call.1} parent=1 // pred_region
      %123 = dma.done [#allocation9], 1024
    $region65: #{tpu_custom_call.1} parent=1 // pred_fallthru
      _
    // Predicated region
    $region66: #{tpu_custom_call.1} parent=1 // pred_check
      _
    $region67: #{tpu_custom_call.1} parent=1 // pred_check_branch
      %125 = sbr.rel (0) target = $region69
    $region68: #{tpu_custom_call.1} parent=1 // pred_region
      %126 = dma.done [#allocation12], 1024
    $region69: #{tpu_custom_call.1} parent=1 // pred_fallthru
      _
    // Predicated region
    $region70: #{tpu_custom_call.1} parent=1 // pred_check
      _
    $region71: #{tpu_custom_call.1} parent=1 // pred_check_branch
      %128 = sbr.rel (0) target = $region73
    $region72: #{tpu_custom_call.1} parent=1 // pred_region
      %129 = dma.done [#allocation12], 1024
    $region73: #{tpu_custom_call.1} parent=1 // pred_fallthru
      _
    %v131 = vld [vmem:[#allocation2] sm:$0x3]
    %v132 = vld [vmem:[#allocation5] sm:$0x3]
    %v133 = vlaneseq
    %v134 = vand.u32 %v133, 127
    %v135 = vlaneseq
    %v136 = vshrl.u32 %v135, 7
    %v137 = vsub.s32 0, %v136
    %v138 = vrot.slane %v131, %v137
    %140 = vbcast.lane.b32.xlu0 %v138, 256
    %v141 = vpop.permute.xlu0 %140
    %v142 = vlaneseq
    %v143 = vshrl.u32 %v142, 7
    %v144 = vsub.s32 1, %v143
    %v145 = vrot.slane %v131, %v144
    %147 = vbcast.lane.b32.xlu0 %v145, 256
    %v148 = vpop.permute.xlu0 %147
    %vm149 = vcmp.eq.s32.totalorder %v134, %v141
    %vm150 = vcmp.eq.s32.totalorder %v134, %v148
    %v151 = vsel %vm149, 1, 0
    %v152 = vsel %vm150, 1, 0
    %v153 = vcvt.s32.f32 %v151
    %v154 = vcvt.s32.f32 %v152
    %v155 = vrot.slane %v153, 4
    %v156 = vadd.f32 %v153, %v155
    %v157 = vrot.slane %v156, 2
    %v158 = vadd.f32 %v156, %v157
    %v159 = vrot.slane %v158, 1
    %v160 = vadd.f32 %v158, %v159
    %v161 = vrot.slane %v154, 4
    %v162 = vadd.f32 %v154, %v161
    %v163 = vrot.slane %v162, 2
    %v164 = vadd.f32 %v162, %v163
    %v165 = vrot.slane %v164, 1
    %v166 = vadd.f32 %v164, %v165
    %v167 = vpack.c.bf16 %v160, %v160
    %v168 = vpack.c.bf16 %v166, %v166
    %vm169 = vcmask 58368
    %v170 = vsel %vm169, %v132, 0.0
    %171 = vadd.xlane.f32.xlu0 %v170
    %v172 = vpop.xlane.xlu0 %171
    %v173 = vmax.f32 %v172, 1.0
    %v174 = vrcp.pop %v173
    %v175 = vld [vmem:[#allocation7] sm:$0xf]
    %v176 = vld [vmem:[#allocation7 + $0x4] sm:$0xf]
    %v177 = vld [vmem:[#allocation7 + $0x8] sm:$0xf]
    %v178 = vld [vmem:[#allocation7 + $0xc] sm:$0xf]
    %v179 = vld [vmem:[#allocation7 + $0x10] sm:$0xf]
    %v180 = vld [vmem:[#allocation7 + $0x14] sm:$0xf]
    %v181 = vld [vmem:[#allocation7 + $0x18] sm:$0xf]
    %v182 = vld [vmem:[#allocation7 + $0x1c] sm:$0xf]
    %v183 = vld [vmem:[#allocation7 + $0x20] sm:$0xf]
    %v184 = vld [vmem:[#allocation7 + $0x24] sm:$0xf]
    %v185 = vld [vmem:[#allocation7 + $0x28] sm:$0xf]
    %v186 = vld [vmem:[#allocation7 + $0x2c] sm:$0xf]
    %v187 = vld [vmem:[#allocation7 + $0x30] sm:$0xf]
    %v188 = vld [vmem:[#allocation7 + $0x34] sm:$0xf]
    %v189 = vld [vmem:[#allocation7 + $0x38] sm:$0xf]
    %v190 = vld [vmem:[#allocation7 + $0x3c] sm:$0xf]
    %v193 = vunpack.c.l.b16 %v167
    %v194 = vunpack.c.l.b16 %v168
    %vm195 = vcmask 1041409
    %v196 = vsel %vm195, %v194, %v193
    %v197 = vpack.c.b16 %v196, %v196
    %v215 = vunpack.c.l.b16 %v175
    %v216 = vunpack.c.l.b16 %v176
    %v217 = vunpack.c.l.b16 %v177
    %v218 = vunpack.c.l.b16 %v178
    %v219 = vunpack.c.l.b16 %v179
    %v220 = vunpack.c.l.b16 %v180
    %v221 = vunpack.c.l.b16 %v181
    %v222 = vunpack.c.l.b16 %v182
    %v223 = vunpack.c.l.b16 %v183
    %v224 = vunpack.c.l.b16 %v184
    %v225 = vunpack.c.l.b16 %v185
    %v226 = vunpack.c.l.b16 %v186
    %v227 = vunpack.c.l.b16 %v187
    %v228 = vunpack.c.l.b16 %v188
    %v229 = vunpack.c.l.b16 %v189
    %v230 = vunpack.c.l.b16 %v190
    %v231 = vpack.c.b16 %v216, %v215
    %v232 = vpack.c.b16 %v218, %v217
    %v233 = vpack.c.b16 %v220, %v219
    %v234 = vpack.c.b16 %v222, %v221
    %v235 = vpack.c.b16 %v224, %v223
    %v236 = vpack.c.b16 %v226, %v225
    %v237 = vpack.c.b16 %v228, %v227
    %v238 = vpack.c.b16 %v230, %v229
    %247 = vmatprep.subr.bf16.mxu0 0
    %248 = vmatpush1.bf16.msra.mxu0 %v231
    %249 = vmatprep.subr.bf16.mxu0 0
    %250 = vmatpush1.bf16.msra.mxu0 %v232
    %251 = vmatprep.subr.bf16.mxu0 0
    %252 = vmatpush1.bf16.msra.mxu0 %v233
    %253 = vmatprep.subr.bf16.mxu0 0
    %254 = vmatpush1.bf16.msra.mxu0 %v234
    %255 = vmatprep.subr.bf16.mxu0 0
    %256 = vmatpush1.bf16.msra.mxu0 %v235
    %257 = vmatprep.subr.bf16.mxu0 0
    %258 = vmatpush1.bf16.msra.mxu0 %v236
    %259 = vmatprep.subr.bf16.mxu0 0
    %260 = vmatpush1.bf16.msra.mxu0 %v237
    %261 = vmatprep.subr.bf16.mxu0 0
    %262 = vmatpush1.bf16.msra.mxu0 %v238
    %263 = vmatprep.subr.bf16.mxu0 0
    %264 = vmatpush1.bf16.msra.mxu0 0
    %265 = vmatprep.subr.bf16.mxu0 0
    %266 = vmatpush1.bf16.msra.mxu0 0
    %267 = vmatprep.subr.bf16.mxu0 0
    %268 = vmatpush1.bf16.msra.mxu0 0
    %269 = vmatprep.subr.bf16.mxu0 0
    %270 = vmatpush1.bf16.msra.mxu0 0
    %271 = vmatprep.subr.bf16.mxu0 0
    %272 = vmatpush1.bf16.msra.mxu0 0
    %273 = vmatprep.subr.bf16.mxu0 0
    %274 = vmatpush1.bf16.msra.mxu0 0
    %275 = vmatprep.subr.bf16.mxu0 0
    %276 = vmatpush1.bf16.msra.mxu0 0
    %277 = vmatprep.subr.bf16.mxu0 0
    %278 = vmatpush1.bf16.msra.mxu0 0
    %279 = vmatprep.mubr.bf16.mxu0 0
    %280 = vmatmul.mubr.bf16.gmra.mrb[0].mxu0 %v197
    %v281 = vpop.f32.mrb[0].mxu0
    %v282 = vadd.f32 0.0, %v281
    %v283 = vpop.f32.mrb[0].mxu0
    %v284 = vpop.f32.mrb[0].mxu0
    %v285 = vpop.f32.mrb[0].mxu0
    %286 = vdwg.mxu0
    %v287 = vmul.f32 %v282, %v174
    %v288 = vld [vmem:[%s4] sm:$0x1]
    %v289 = vld [vmem:[%s4 + $0x1] sm:$0x1]
    %v290 = vpack.c.bf16 %v287, %v287
    %v291 = vld [vmem:[#allocation8] sm:$0xff]
    %v292 = vld [vmem:[#allocation8 + $0x8] sm:$0xf]
    %v293 = vld [vmem:[#allocation8 + $0xc] sm:$0xff]
    %v294 = vld [vmem:[#allocation8 + $0x14] sm:$0xf]
    %v295 = vld [vmem:[#allocation8 + $0x18] sm:$0xff]
    %v296 = vld [vmem:[#allocation8 + $0x20] sm:$0xf]
    %v297 = vld [vmem:[#allocation8 + $0x24] sm:$0xff]
    %v298 = vld [vmem:[#allocation8 + $0x2c] sm:$0xf]
    %v299 = vld [vmem:[#allocation8 + $0x30] sm:$0xff]
    %v300 = vld [vmem:[#allocation8 + $0x38] sm:$0xf]
    %v301 = vld [vmem:[#allocation8 + $0x3c] sm:$0xff]
    %v302 = vld [vmem:[#allocation8 + $0x44] sm:$0xf]
    %v303 = vld [vmem:[#allocation8 + $0x48] sm:$0xff]
    %v304 = vld [vmem:[#allocation8 + $0x50] sm:$0xf]
    %v305 = vld [vmem:[#allocation8 + $0x54] sm:$0xff]
    %v306 = vld [vmem:[#allocation8 + $0x5c] sm:$0xf]
    %v307 = vld [vmem:[#allocation8 + $0x60] sm:$0xff]
    %v308 = vld [vmem:[#allocation8 + $0x68] sm:$0xf]
    %v309 = vld [vmem:[#allocation8 + $0x6c] sm:$0xff]
    %v310 = vld [vmem:[#allocation8 + $0x74] sm:$0xf]
    %v311 = vld [vmem:[#allocation8 + $0x78] sm:$0xff]
    %v312 = vld [vmem:[#allocation8 + $0x80] sm:$0xf]
    %v313 = vld [vmem:[#allocation8 + $0x84] sm:$0xff]
    %v314 = vld [vmem:[#allocation8 + $0x8c] sm:$0xf]
    %v315 = vld [vmem:[#allocation8 + $0x90] sm:$0xff]
    %v316 = vld [vmem:[#allocation8 + $0x98] sm:$0xf]
    %v317 = vld [vmem:[#allocation8 + $0x9c] sm:$0xff]
    %v318 = vld [vmem:[#allocation8 + $0xa4] sm:$0xf]
    %v319 = vld [vmem:[#allocation8 + $0xa8] sm:$0xff]
    %v320 = vld [vmem:[#allocation8 + $0xb0] sm:$0xf]
    %v321 = vld [vmem:[#allocation8 + $0xb4] sm:$0xff]
    %v322 = vld [vmem:[#allocation8 + $0xbc] sm:$0xf]
    %v323 = vld [vmem:[%s6] sm:$0x7]
    %v325 = vlaneseq
    %v326 = vshrl.u32 %v325, 7
    %v327 = vsub.s32 0, %v326
    %v328 = vrot.slane %v323, %v327
    %v329 = vlaneseq
    %v330 = vshrl.u32 %v329, 7
    %v331 = vsub.s32 1, %v330
    %v332 = vrot.slane %v323, %v331
    %v333 = vlaneseq
    %v334 = vshrl.u32 %v333, 7
    %v335 = vsub.s32 2, %v334
    %v336 = vrot.slane %v323, %v335
    %v372 = vunpack.c.l.b16 %v291
    %v373 = vunpack.c.h.b16 %v291
    %v374 = vunpack.c.l.b16 %v292
    %v375 = vunpack.c.l.b16 %v293
    %v376 = vunpack.c.h.b16 %v293
    %v377 = vunpack.c.l.b16 %v294
    %v378 = vunpack.c.l.b16 %v295
    %v379 = vunpack.c.h.b16 %v295
    %v380 = vunpack.c.l.b16 %v296
    %v381 = vunpack.c.l.b16 %v297
    %v382 = vunpack.c.h.b16 %v297
    %v383 = vunpack.c.l.b16 %v298
    %v384 = vunpack.c.l.b16 %v299
    %v385 = vunpack.c.h.b16 %v299
    %v386 = vunpack.c.l.b16 %v300
    %v387 = vunpack.c.l.b16 %v301
    %v388 = vunpack.c.h.b16 %v301
    %v389 = vunpack.c.l.b16 %v302
    %v390 = vunpack.c.l.b16 %v303
    %v391 = vunpack.c.h.b16 %v303
    %v392 = vunpack.c.l.b16 %v304
    %v393 = vunpack.c.l.b16 %v305
    %v394 = vunpack.c.h.b16 %v305
    %v395 = vunpack.c.l.b16 %v306
    %v396 = vunpack.c.l.b16 %v307
    %v397 = vunpack.c.h.b16 %v307
    %v398 = vunpack.c.l.b16 %v308
    %v399 = vunpack.c.l.b16 %v309
    %v400 = vunpack.c.h.b16 %v309
    %v401 = vunpack.c.l.b16 %v310
    %v402 = vunpack.c.l.b16 %v311
    %v403 = vunpack.c.h.b16 %v311
    %v404 = vunpack.c.l.b16 %v312
    %v405 = vunpack.c.l.b16 %v313
    %v406 = vunpack.c.h.b16 %v313
    %v407 = vunpack.c.l.b16 %v314
    %v408 = vunpack.c.l.b16 %v315
    %v409 = vunpack.c.h.b16 %v315
    %v410 = vunpack.c.l.b16 %v316
    %v411 = vunpack.c.l.b16 %v317
    %v412 = vunpack.c.h.b16 %v317
    %v413 = vunpack.c.l.b16 %v318
    %v414 = vunpack.c.l.b16 %v319
    %v415 = vunpack.c.h.b16 %v319
    %v416 = vunpack.c.l.b16 %v320
    %v417 = vunpack.c.l.b16 %v321
    %v418 = vunpack.c.h.b16 %v321
    %v419 = vunpack.c.l.b16 %v322
    %v420 = vpack.c.b16 %v375, %v372
    %v421 = vpack.c.b16 %v376, %v373
    %v422 = vpack.c.b16 %v377, %v374
    %v423 = vpack.c.b16 %v381, %v378
    %v424 = vpack.c.b16 %v382, %v379
    %v425 = vpack.c.b16 %v383, %v380
    %v426 = vpack.c.b16 %v387, %v384
    %v427 = vpack.c.b16 %v388, %v385
    %v428 = vpack.c.b16 %v389, %v386
    %v429 = vpack.c.b16 %v393, %v390
    %v430 = vpack.c.b16 %v394, %v391
    %v431 = vpack.c.b16 %v395, %v392
    %v432 = vpack.c.b16 %v399, %v396
    %v433 = vpack.c.b16 %v400, %v397
    %v434 = vpack.c.b16 %v401, %v398
    %v435 = vpack.c.b16 %v405, %v402
    %v436 = vpack.c.b16 %v406, %v403
    %v437 = vpack.c.b16 %v407, %v404
    %v438 = vpack.c.b16 %v411, %v408
    %v439 = vpack.c.b16 %v412, %v409
    %v440 = vpack.c.b16 %v413, %v410
    %v441 = vpack.c.b16 %v417, %v414
    %v442 = vpack.c.b16 %v418, %v415
    %v443 = vpack.c.b16 %v419, %v416
    %468 = vmatprep.subr.bf16.mxu0 %v421
    %469 = vmatpush1.bf16.msra.mxu0 %v420
    %470 = vmatprep.subr.bf16.mxu0 %v424
    %471 = vmatpush1.bf16.msra.mxu0 %v423
    %472 = vmatprep.subr.bf16.mxu0 %v427
    %473 = vmatpush1.bf16.msra.mxu0 %v426
    %474 = vmatprep.subr.bf16.mxu0 %v430
    %475 = vmatpush1.bf16.msra.mxu0 %v429
    %476 = vmatprep.subr.bf16.mxu0 %v433
    %477 = vmatpush1.bf16.msra.mxu0 %v432
    %478 = vmatprep.subr.bf16.mxu0 %v436
    %479 = vmatpush1.bf16.msra.mxu0 %v435
    %480 = vmatprep.subr.bf16.mxu0 %v439
    %481 = vmatpush1.bf16.msra.mxu0 %v438
    %482 = vmatprep.subr.bf16.mxu0 %v442
    %483 = vmatpush1.bf16.msra.mxu0 %v441
    %484 = vmatprep.subr.bf16.mxu0 0
    %485 = vmatpush1.bf16.msra.mxu0 0
    %486 = vmatprep.subr.bf16.mxu0 0
    %487 = vmatpush1.bf16.msra.mxu0 0
    %488 = vmatprep.subr.bf16.mxu0 0
    %489 = vmatpush1.bf16.msra.mxu0 0
    %490 = vmatprep.subr.bf16.mxu0 0
    %491 = vmatpush1.bf16.msra.mxu0 0
    %492 = vmatprep.subr.bf16.mxu0 0
    %493 = vmatpush1.bf16.msra.mxu0 0
    %494 = vmatprep.subr.bf16.mxu0 0
    %495 = vmatpush1.bf16.msra.mxu0 0
    %496 = vmatprep.subr.bf16.mxu0 0
    %497 = vmatpush1.bf16.msra.mxu0 0
    %498 = vmatprep.subr.bf16.mxu0 0
    %499 = vmatpush1.bf16.msra.mxu0 0
    %500 = vmatprep.mubr.bf16.mxu0 0
    %501 = vmatmul.mubr.bf16.gmra.mrb[0].mxu0 %v290
    %v502 = vpop.f32.mrb[0].mxu0
    %v503 = vadd.f32 %v328, %v502
    %v504 = vpop.f32.mrb[0].mxu0
    %v505 = vadd.f32 %v332, %v504
    %v506 = vpop.f32.mrb[0].mxu0
    %v507 = vpop.f32.mrb[0].mxu0
    %508 = vdwg.mxu0
    %509 = vmatprep.subr.bf16.mxu0 0
    %510 = vmatpush1.bf16.msra.mxu0 %v422
    %511 = vmatprep.subr.bf16.mxu0 0
    %512 = vmatpush1.bf16.msra.mxu0 %v425
    %513 = vmatprep.subr.bf16.mxu0 0
    %514 = vmatpush1.bf16.msra.mxu0 %v428
    %515 = vmatprep.subr.bf16.mxu0 0
    %516 = vmatpush1.bf16.msra.mxu0 %v431
    %517 = vmatprep.subr.bf16.mxu0 0
    %518 = vmatpush1.bf16.msra.mxu0 %v434
    %519 = vmatprep.subr.bf16.mxu0 0
    %520 = vmatpush1.bf16.msra.mxu0 %v437
    %521 = vmatprep.subr.bf16.mxu0 0
    %522 = vmatpush1.bf16.msra.mxu0 %v440
    %523 = vmatprep.subr.bf16.mxu0 0
    %524 = vmatpush1.bf16.msra.mxu0 %v443
    %525 = vmatprep.subr.bf16.mxu0 0
    %526 = vmatpush1.bf16.msra.mxu0 0
    %527 = vmatprep.subr.bf16.mxu0 0
    %528 = vmatpush1.bf16.msra.mxu0 0
    %529 = vmatprep.subr.bf16.mxu0 0
    %530 = vmatpush1.bf16.msra.mxu0 0
    %531 = vmatprep.subr.bf16.mxu0 0
    %532 = vmatpush1.bf16.msra.mxu0 0
    %533 = vmatprep.subr.bf16.mxu0 0
    %534 = vmatpush1.bf16.msra.mxu0 0
    %535 = vmatprep.subr.bf16.mxu0 0
    %536 = vmatpush1.bf16.msra.mxu0 0
    %537 = vmatprep.subr.bf16.mxu0 0
    %538 = vmatpush1.bf16.msra.mxu0 0
    %539 = vmatprep.subr.bf16.mxu0 0
    %540 = vmatpush1.bf16.msra.mxu0 0
    %541 = vmatprep.mubr.bf16.mxu0 0
    %542 = vmatmul.mubr.bf16.gmra.mrb[0].mxu0 %v290
    %v543 = vpop.f32.mrb[0].mxu0
    %v544 = vadd.f32 %v336, %v543
    %v545 = vpop.f32.mrb[0].mxu0
    %v546 = vpop.f32.mrb[0].mxu0
    %v547 = vpop.f32.mrb[0].mxu0
    %548 = vdwg.mxu0
    %v549 = vxor.u32 %v503, 2147483648
    %v550 = vmul.f32 %v549, 1.442695
    %v551 = vpow.pop %v550
    %v552 = vadd.f32 %v551, 1.0
    %v553 = vrcp.pop %v552
    %v554 = vmul.f32 1.0, %v553
    %v555 = vxor.u32 %v505, 2147483648
    %v556 = vmul.f32 %v555, 1.442695
    %v557 = vpow.pop %v556
    %v558 = vadd.f32 %v557, 1.0
    %v559 = vrcp.pop %v558
    %v560 = vmul.f32 1.0, %v559
    %v561 = vlaneseq
    %v562 = vshrl.u32 %v561, 7
    %v563 = vsub.s32 0, %v562
    %v564 = vrot.slane %v288, %v563
    %v565 = vmul.f32 %v554, %v564
    %v566 = vadd.f32 %v544, %v565
    %v567 = vtanh.pop %v566
    %v568 = vsub.f32 1.0, %v560
    %v569 = vmul.f32 %v568, %v567
    %v570 = vlaneseq
    %v571 = vshrl.u32 %v570, 7
    %v572 = vsub.s32 0, %v571
    %v573 = vrot.slane %v289, %v572
    %v574 = vmul.f32 %v560, %v573
    %v575 = vadd.f32 %v569, %v574
    %v576 = vld [vmem:[%s10] sm:$0x1]
    %v577 = vpack.c.bf16 %v575, %v575
    %v578 = vld [vmem:[#allocation10] sm:$0xf]
    %v579 = vld [vmem:[#allocation10 + $0x4] sm:$0xf]
    %v580 = vld [vmem:[#allocation10 + $0x8] sm:$0xf]
    %v581 = vld [vmem:[#allocation10 + $0xc] sm:$0xf]
    %v582 = vld [vmem:[#allocation10 + $0x10] sm:$0xf]
    %v583 = vld [vmem:[#allocation10 + $0x14] sm:$0xf]
    %v584 = vld [vmem:[#allocation10 + $0x18] sm:$0xf]
    %v585 = vld [vmem:[#allocation10 + $0x1c] sm:$0xf]
    %v586 = vld [vmem:[#allocation10 + $0x20] sm:$0xf]
    %v587 = vld [vmem:[#allocation10 + $0x24] sm:$0xf]
    %v588 = vld [vmem:[#allocation10 + $0x28] sm:$0xf]
    %v589 = vld [vmem:[#allocation10 + $0x2c] sm:$0xf]
    %v590 = vld [vmem:[#allocation10 + $0x30] sm:$0xf]
    %v591 = vld [vmem:[#allocation10 + $0x34] sm:$0xf]
    %v592 = vld [vmem:[#allocation10 + $0x38] sm:$0xf]
    %v593 = vld [vmem:[#allocation10 + $0x3c] sm:$0xf]
    %v594 = vlaneseq
    %v595 = vshrl.u32 %v594, 7
    %v596 = vsub.s32 0, %v595
    %v597 = vrot.slane %v576, %v596
    %v614 = vunpack.c.l.b16 %v578
    %v615 = vunpack.c.l.b16 %v579
    %v616 = vunpack.c.l.b16 %v580
    %v617 = vunpack.c.l.b16 %v581
    %v618 = vunpack.c.l.b16 %v582
    %v619 = vunpack.c.l.b16 %v583
    %v620 = vunpack.c.l.b16 %v584
    %v621 = vunpack.c.l.b16 %v585
    %v622 = vunpack.c.l.b16 %v586
    %v623 = vunpack.c.l.b16 %v587
    %v624 = vunpack.c.l.b16 %v588
    %v625 = vunpack.c.l.b16 %v589
    %v626 = vunpack.c.l.b16 %v590
    %v627 = vunpack.c.l.b16 %v591
    %v628 = vunpack.c.l.b16 %v592
    %v629 = vunpack.c.l.b16 %v593
    %v630 = vpack.c.b16 %v615, %v614
    %v631 = vpack.c.b16 %v617, %v616
    %v632 = vpack.c.b16 %v619, %v618
    %v633 = vpack.c.b16 %v621, %v620
    %v634 = vpack.c.b16 %v623, %v622
    %v635 = vpack.c.b16 %v625, %v624
    %v636 = vpack.c.b16 %v627, %v626
    %v637 = vpack.c.b16 %v629, %v628
    %646 = vmatprep.subr.bf16.mxu0 0
    %647 = vmatpush1.bf16.msra.mxu0 %v630
    %648 = vmatprep.subr.bf16.mxu0 0
    %649 = vmatpush1.bf16.msra.mxu0 %v631
    %650 = vmatprep.subr.bf16.mxu0 0
    %651 = vmatpush1.bf16.msra.mxu0 %v632
    %652 = vmatprep.subr.bf16.mxu0 0
    %653 = vmatpush1.bf16.msra.mxu0 %v633
    %654 = vmatprep.subr.bf16.mxu0 0
    %655 = vmatpush1.bf16.msra.mxu0 %v634
    %656 = vmatprep.subr.bf16.mxu0 0
    %657 = vmatpush1.bf16.msra.mxu0 %v635
    %658 = vmatprep.subr.bf16.mxu0 0
    %659 = vmatpush1.bf16.msra.mxu0 %v636
    %660 = vmatprep.subr.bf16.mxu0 0
    %661 = vmatpush1.bf16.msra.mxu0 %v637
    %662 = vmatprep.subr.bf16.mxu0 0
    %663 = vmatpush1.bf16.msra.mxu0 0
    %664 = vmatprep.subr.bf16.mxu0 0
    %665 = vmatpush1.bf16.msra.mxu0 0
    %666 = vmatprep.subr.bf16.mxu0 0
    %667 = vmatpush1.bf16.msra.mxu0 0
    %668 = vmatprep.subr.bf16.mxu0 0
    %669 = vmatpush1.bf16.msra.mxu0 0
    %670 = vmatprep.subr.bf16.mxu0 0
    %671 = vmatpush1.bf16.msra.mxu0 0
    %672 = vmatprep.subr.bf16.mxu0 0
    %673 = vmatpush1.bf16.msra.mxu0 0
    %674 = vmatprep.subr.bf16.mxu0 0
    %675 = vmatpush1.bf16.msra.mxu0 0
    %676 = vmatprep.subr.bf16.mxu0 0
    %677 = vmatpush1.bf16.msra.mxu0 0
    %678 = vmatprep.mubr.bf16.mxu0 0
    %679 = vmatmul.mubr.bf16.gmra.mrb[0].mxu0 %v577
    %v680 = vpop.f32.mrb[0].mxu0
    %v681 = vadd.f32 %v597, %v680
    %v682 = vpop.f32.mrb[0].mxu0
    %v683 = vpop.f32.mrb[0].mxu0
    %v684 = vpop.f32.mrb[0].mxu0
    %685 = vdwg.mxu0
    %v686 = vmax.f32 %v681, 0.0
    %v687 = vld [vmem:[%s10 + $0x1] sm:$0x1]
    %v688 = vpack.c.bf16 %v686, %v686
    %v689 = vld [vmem:[#allocation11] sm:$0xf]
    %v690 = vld [vmem:[#allocation11 + $0x4] sm:$0xf]
    %v691 = vld [vmem:[#allocation11 + $0x8] sm:$0xf]
    %v692 = vld [vmem:[#allocation11 + $0xc] sm:$0xf]
    %v693 = vld [vmem:[#allocation11 + $0x10] sm:$0xf]
    %v694 = vld [vmem:[#allocation11 + $0x14] sm:$0xf]
    %v695 = vld [vmem:[#allocation11 + $0x18] sm:$0xf]
    %v696 = vld [vmem:[#allocation11 + $0x1c] sm:$0xf]
    %v697 = vld [vmem:[#allocation11 + $0x20] sm:$0xf]
    %v698 = vld [vmem:[#allocation11 + $0x24] sm:$0xf]
    %v699 = vld [vmem:[#allocation11 + $0x28] sm:$0xf]
    %v700 = vld [vmem:[#allocation11 + $0x2c] sm:$0xf]
    %v701 = vld [vmem:[#allocation11 + $0x30] sm:$0xf]
    %v702 = vld [vmem:[#allocation11 + $0x34] sm:$0xf]
    %v703 = vld [vmem:[#allocation11 + $0x38] sm:$0xf]
    %v704 = vld [vmem:[#allocation11 + $0x3c] sm:$0xf]
    %v705 = vlaneseq
    %v706 = vshrl.u32 %v705, 7
    %v707 = vsub.s32 0, %v706
    %v708 = vrot.slane %v687, %v707
    %v725 = vunpack.c.l.b16 %v689
    %v726 = vunpack.c.l.b16 %v690
    %v727 = vunpack.c.l.b16 %v691
    %v728 = vunpack.c.l.b16 %v692
    %v729 = vunpack.c.l.b16 %v693
    %v730 = vunpack.c.l.b16 %v694
    %v731 = vunpack.c.l.b16 %v695
    %v732 = vunpack.c.l.b16 %v696
    %v733 = vunpack.c.l.b16 %v697
    %v734 = vunpack.c.l.b16 %v698
    %v735 = vunpack.c.l.b16 %v699
    %v736 = vunpack.c.l.b16 %v700
    %v737 = vunpack.c.l.b16 %v701
    %v738 = vunpack.c.l.b16 %v702
    %v739 = vunpack.c.l.b16 %v703
    %v740 = vunpack.c.l.b16 %v704
    %v741 = vpack.c.b16 %v726, %v725
    %v742 = vpack.c.b16 %v728, %v727
    %v743 = vpack.c.b16 %v730, %v729
    %v744 = vpack.c.b16 %v732, %v731
    %v745 = vpack.c.b16 %v734, %v733
    %v746 = vpack.c.b16 %v736, %v735
    %v747 = vpack.c.b16 %v738, %v737
    %v748 = vpack.c.b16 %v740, %v739
    %757 = vmatprep.subr.bf16.mxu0 0
    %758 = vmatpush1.bf16.msra.mxu0 %v741
    %759 = vmatprep.subr.bf16.mxu0 0
    %760 = vmatpush1.bf16.msra.mxu0 %v742
    %761 = vmatprep.subr.bf16.mxu0 0
    %762 = vmatpush1.bf16.msra.mxu0 %v743
    %763 = vmatprep.subr.bf16.mxu0 0
    %764 = vmatpush1.bf16.msra.mxu0 %v744
    %765 = vmatprep.subr.bf16.mxu0 0
    %766 = vmatpush1.bf16.msra.mxu0 %v745
    %767 = vmatprep.subr.bf16.mxu0 0
    %768 = vmatpush1.bf16.msra.mxu0 %v746
    %769 = vmatprep.subr.bf16.mxu0 0
    %770 = vmatpush1.bf16.msra.mxu0 %v747
    %771 = vmatprep.subr.bf16.mxu0 0
    %772 = vmatpush1.bf16.msra.mxu0 %v748
    %773 = vmatprep.subr.bf16.mxu0 0
    %774 = vmatpush1.bf16.msra.mxu0 0
    %775 = vmatprep.subr.bf16.mxu0 0
    %776 = vmatpush1.bf16.msra.mxu0 0
    %777 = vmatprep.subr.bf16.mxu0 0
    %778 = vmatpush1.bf16.msra.mxu0 0
    %779 = vmatprep.subr.bf16.mxu0 0
    %780 = vmatpush1.bf16.msra.mxu0 0
    %781 = vmatprep.subr.bf16.mxu0 0
    %782 = vmatpush1.bf16.msra.mxu0 0
    %783 = vmatprep.subr.bf16.mxu0 0
    %784 = vmatpush1.bf16.msra.mxu0 0
    %785 = vmatprep.subr.bf16.mxu0 0
    %786 = vmatpush1.bf16.msra.mxu0 0
    %787 = vmatprep.subr.bf16.mxu0 0
    %788 = vmatpush1.bf16.msra.mxu0 0
    %789 = vmatprep.mubr.bf16.mxu0 0
    %790 = vmatmul.mubr.bf16.gmra.mrb[0].mxu0 %v688
    %v791 = vpop.f32.mrb[0].mxu0
    %v792 = vadd.f32 %v708, %v791
    %v793 = vpop.f32.mrb[0].mxu0
    %v794 = vpop.f32.mrb[0].mxu0
    %v795 = vpop.f32.mrb[0].mxu0
    %796 = vdwg.mxu0
    %v797 = vmax.f32 %v792, 0.0
    %v798 = vld [vmem:[%s10 + $0x2] sm:$0x1]
    %v799 = vpack.c.bf16 %v797, %v797
    %v800 = vld [vmem:[#allocation13] sm:$0xf]
    %v801 = vld [vmem:[#allocation13 + $0x4] sm:$0xf]
    %v802 = vld [vmem:[#allocation13 + $0x8] sm:$0xf]
    %v803 = vld [vmem:[#allocation13 + $0xc] sm:$0xf]
    %v804 = vld [vmem:[#allocation13 + $0x10] sm:$0xf]
    %v805 = vld [vmem:[#allocation13 + $0x14] sm:$0xf]
    %v806 = vld [vmem:[#allocation13 + $0x18] sm:$0xf]
    %v807 = vld [vmem:[#allocation13 + $0x1c] sm:$0xf]
    %v808 = vld [vmem:[#allocation13 + $0x20] sm:$0xf]
    %v809 = vld [vmem:[#allocation13 + $0x24] sm:$0xf]
    %v810 = vld [vmem:[#allocation13 + $0x28] sm:$0xf]
    %v811 = vld [vmem:[#allocation13 + $0x2c] sm:$0xf]
    %v812 = vld [vmem:[#allocation13 + $0x30] sm:$0xf]
    %v813 = vld [vmem:[#allocation13 + $0x34] sm:$0xf]
    %v814 = vld [vmem:[#allocation13 + $0x38] sm:$0xf]
    %v815 = vld [vmem:[#allocation13 + $0x3c] sm:$0xf]
    %v816 = vlaneseq
    %v817 = vshrl.u32 %v816, 7
    %v818 = vsub.s32 0, %v817
    %v819 = vrot.slane %v798, %v818
    %v836 = vunpack.c.l.b16 %v800
    %v837 = vunpack.c.l.b16 %v801
    %v838 = vunpack.c.l.b16 %v802
    %v839 = vunpack.c.l.b16 %v803
    %v840 = vunpack.c.l.b16 %v804
    %v841 = vunpack.c.l.b16 %v805
    %v842 = vunpack.c.l.b16 %v806
    %v843 = vunpack.c.l.b16 %v807
    %v844 = vunpack.c.l.b16 %v808
    %v845 = vunpack.c.l.b16 %v809
    %v846 = vunpack.c.l.b16 %v810
    %v847 = vunpack.c.l.b16 %v811
    %v848 = vunpack.c.l.b16 %v812
    %v849 = vunpack.c.l.b16 %v813
    %v850 = vunpack.c.l.b16 %v814
    %v851 = vunpack.c.l.b16 %v815
    %v852 = vpack.c.b16 %v837, %v836
    %v853 = vpack.c.b16 %v839, %v838
    %v854 = vpack.c.b16 %v841, %v840
    %v855 = vpack.c.b16 %v843, %v842
    %v856 = vpack.c.b16 %v845, %v844
    %v857 = vpack.c.b16 %v847, %v846
    %v858 = vpack.c.b16 %v849, %v848
    %v859 = vpack.c.b16 %v851, %v850
    %868 = vmatprep.subr.bf16.mxu0 0
    %869 = vmatpush1.bf16.msra.mxu0 %v852
    %870 = vmatprep.subr.bf16.mxu0 0
    %871 = vmatpush1.bf16.msra.mxu0 %v853
    %872 = vmatprep.subr.bf16.mxu0 0
    %873 = vmatpush1.bf16.msra.mxu0 %v854
    %874 = vmatprep.subr.bf16.mxu0 0
    %875 = vmatpush1.bf16.msra.mxu0 %v855
    %876 = vmatprep.subr.bf16.mxu0 0
    %877 = vmatpush1.bf16.msra.mxu0 %v856
    %878 = vmatprep.subr.bf16.mxu0 0
    %879 = vmatpush1.bf16.msra.mxu0 %v857
    %880 = vmatprep.subr.bf16.mxu0 0
    %881 = vmatpush1.bf16.msra.mxu0 %v858
    %882 = vmatprep.subr.bf16.mxu0 0
    %883 = vmatpush1.bf16.msra.mxu0 %v859
    %884 = vmatprep.subr.bf16.mxu0 0
    %885 = vmatpush1.bf16.msra.mxu0 0
    %886 = vmatprep.subr.bf16.mxu0 0
    %887 = vmatpush1.bf16.msra.mxu0 0
    %888 = vmatprep.subr.bf16.mxu0 0
    %889 = vmatpush1.bf16.msra.mxu0 0
    %890 = vmatprep.subr.bf16.mxu0 0
    %891 = vmatpush1.bf16.msra.mxu0 0
    %892 = vmatprep.subr.bf16.mxu0 0
    %893 = vmatpush1.bf16.msra.mxu0 0
    %894 = vmatprep.subr.bf16.mxu0 0
    %895 = vmatpush1.bf16.msra.mxu0 0
    %896 = vmatprep.subr.bf16.mxu0 0
    %897 = vmatpush1.bf16.msra.mxu0 0
    %898 = vmatprep.subr.bf16.mxu0 0
    %899 = vmatpush1.bf16.msra.mxu0 0
    %900 = vmatprep.mubr.bf16.mxu0 0
    %901 = vmatmul.mubr.bf16.gmra.mrb[0].mxu0 %v799
    %v902 = vpop.f32.mrb[0].mxu0
    %v903 = vadd.f32 %v819, %v902
    %v904 = vpop.f32.mrb[0].mxu0
    %v905 = vpop.f32.mrb[0].mxu0
    %v906 = vpop.f32.mrb[0].mxu0
    %907 = vdwg.mxu0
    %vm908 = vcmp.lt.s32.totalorder %v134, 7
    %v909 = vsel %vm908, %v903, -inf
    %vm910 = vcmask 1041408
    %v911 = vsel %vm910, %v909, -inf
    %912 = vmax.xlane.f32.xlu0 %v911
    %v913 = vpop.xlane.xlu0 %912
    %v914 = vsub.f32 %v909, %v913
    %v915 = vmul.f32 %v914, 1.442695
    %v916 = vpow.pop %v915
    %v917 = vsel %vm910, %v916, 0.0
    %918 = vadd.xlane.f32.xlu0 %v917
    %v919 = vpop.xlane.xlu0 %918
    %v920 = vlog2.pop %v919
    %v921 = vmul.f32 %v920, 0.6931472
    %v922 = vadd.f32 %v913, %v921
    %v923 = vld [vmem:[%s2] sm:$0x3]
    %924 = vset.pattern.permute.xlu0 0
    %925 = vperm.xlu0 %924, %v923
    %v926 = vpop.permute.xlu0 %925
    %vm927 = vcmp.eq.s32.totalorder %v134, %v926
    %v928 = vsel %vm927, %v903, 0.0
    %v929 = vsel %vm910, %v928, 0.0
    %930 = vadd.xlane.f32.xlu0 %v929
    %v931 = vpop.xlane.xlu0 %930
    %vm932 = vcmp.eq.s32.totalorder %v134, 127
    %v933 = vsub.f32 %v922, %v931
    %v934 = vsel %vm932, %v933, %v903
    %935 = vst [vmem:[#allocation14] sm:$0x3] %v934
    // Predicated region
    $region74: #{tpu_custom_call.1} parent=1 // pred_check
      _
    $region75: #{tpu_custom_call.1} parent=1 // pred_check_branch
      %937 = sbr.rel (0) target = $region77
    $region76: #{tpu_custom_call.1} parent=1 // pred_region
      %s939 = ssub.s32 32, 32
      %940 = vsyncadd [#allocation4], %s939
      %s942 = sshll.u32 [#allocation14], 4
      %s943 = int_to_ptr.vmem [resolvable:$true] %s942
      %945 = dma.vmem_to_hbm [thread:$0]  %s943, 32, %s11, [#allocation4]
    $region77: #{tpu_custom_call.1} parent=1 // pred_fallthru
      _
    // Predicated region
    $region78: #{tpu_custom_call.1} parent=1 // pred_check
      _
    $region79: #{tpu_custom_call.1} parent=1 // pred_check_branch
      %947 = sbr.rel (0) target = $region81
    $region80: #{tpu_custom_call.1} parent=1 // pred_region
      %948 = dma.done [#allocation4], 32
    $region81: #{tpu_custom_call.1} parent=1 // pred_fallthru
      _
    %949 = vsyncpa [#allocation3], 1
    %950 = vsyncpa [#allocation6], 1
    %951 = vsyncpa [#allocation9], 1
    %952 = vsyncpa [#allocation12], 1
    %953 = vsyncpa [#allocation4], 1

</llo_original>
